<compile_context>
chip_gen: v5e
topology: v5e:2x2
jax: 0.10.0
libtpu: 0.0.40
codegen_flags: <defaults>
</compile_context>

<pallas_src>
import jax
import jax.numpy as jnp
from jax.experimental import pallas as pl
from jax.experimental.pallas import tpu as pltpu

LN_EPS = 1e-5


def _round_up(x, m):
    return ((x + m - 1) // m) * m


def _cdiv(a, b):
    return (a + b - 1) // b


def _layer_norm_rows(y, gamma, beta, out_dtype):
    """Row-wise LayerNorm of an f32 [rows, D] tile. Two-pass variance (torch-parity)."""
    inv_d = jnp.float32(1.0 / y.shape[-1])
    mean = jnp.sum(y, axis=-1, keepdims=True) * inv_d
    yc = y - mean
    var = jnp.sum(yc * yc, axis=-1, keepdims=True) * inv_d
    normed = yc * jax.lax.rsqrt(var + jnp.float32(LN_EPS))
    return (normed * gamma.astype(jnp.float32) + beta.astype(jnp.float32)).astype(out_dtype)


def _self_output_fused_kernel(x_ref, w_ref, b_ref, res_ref, g_ref, beta_ref, o_ref):
    # Resident-weight fast path (num_k == 1): everything in one step, no scratch.
    # x_ref: (tm, K); w_ref: (K, D); b/g/beta: (1, D); res/o: (tm, D).
    y = jnp.dot(x_ref[...], w_ref[...], preferred_element_type=jnp.float32)
    y = y + b_ref[...].astype(jnp.float32) + res_ref[...].astype(jnp.float32)
    # dropout: identity in eval mode.
    o_ref[...] = _layer_norm_rows(y, g_ref[...], beta_ref[...], o_ref.dtype)


def _self_output_ktiled_kernel(x_ref, w_ref, b_ref, res_ref, g_ref, beta_ref, o_ref, acc_ref):
    # K-tiled path: f32 accumulator resident across the (arbitrary) K grid axis.
    k = pl.program_id(1)
    part = jnp.dot(x_ref[...], w_ref[...], preferred_element_type=jnp.float32)

    @pl.when(k == 0)
    def _init():
        # Fold bias + residual into the first partial sum: no zero-fill, no read-modify-write
        # on step 0, and two fewer full-tile VPU adds in the serial finalize epilogue.
        acc_ref[...] = (part
                        + b_ref[...].astype(jnp.float32)
                        + res_ref[...].astype(jnp.float32))

    @pl.when(k > 0)
    def _accum():
        acc_ref[...] += part

    @pl.when(k == pl.num_programs(1) - 1)
    def _finalize():
        # dropout: identity in eval mode.
        o_ref[...] = _layer_norm_rows(acc_ref[...], g_ref[...], beta_ref[...], o_ref.dtype)


def self_output_forward(hidden_states, input_tensor, weight, bias, gamma, beta,
                        *, row_tile=512, k_tile=None, weight_vmem_budget=None):
    """hidden_states: [B, S, input_dim]; input_tensor: [B, S, output_dim].

    weight is stored (input_dim, output_dim) (i.e. torch Linear weight transposed) so the
    kernel computes x @ W.  Feeding bf16 activations/weight halves HBM traffic and is
    supported (matmul accumulates in f32; LayerNorm math is f32).
    """
    B, S, input_dim = hidden_states.shape
    output_dim = input_tensor.shape[-1]
    rows = B * S
    out_dtype = hidden_states.dtype

    x2d = hidden_states.reshape(rows, input_dim)
    res2d = input_tensor.reshape(rows, output_dim)
    b2d = bias.reshape(1, output_dim)
    g2d = gamma.reshape(1, output_dim)
    beta2d = beta.reshape(1, output_dim)

    x_itemsize = jnp.dtype(x2d.dtype).itemsize
    w_itemsize = jnp.dtype(weight.dtype).itemsize
    res_itemsize = jnp.dtype(res2d.dtype).itemsize
    out_itemsize = jnp.dtype(out_dtype).itemsize

    # ---- Per-generation VMEM cap (leave headroom for compiler-internal scratch). ----
    # v5e/v6e: 128 MiB physical -> ~112 MiB usable; v7x: 64 MiB -> ~48 MiB usable.
    try:
        vmem_cap = int(pltpu.get_tpu_info().vmem_capacity_bytes)
    except Exception:  # hardware query only; safe conservative default (v7x-sized)
        vmem_cap = 64 << 20
    usable_vmem = max(32 << 20, vmem_cap - (16 << 20))
    if weight_vmem_budget is None:
        weight_vmem_budget = usable_vmem // 3   # ~37 MiB on v5e/v6e, ~16 MiB on v7x

    # ---- K tiling: only when the full weight would blow the residency budget. ----
    w_bytes = input_dim * output_dim * w_itemsize
    if k_tile is None:
        if w_bytes <= weight_vmem_budget:
            k_tile = input_dim
        else:
            per_k = 2 * output_dim * w_itemsize            # K-tiled weight double-buffers
            k_tile = max(256, (weight_vmem_budget // per_k) // 256 * 256)
            k_tile = min(k_tile, _round_up(input_dim, 256))
            # Prefer a tile that evenly divides input_dim -> never pad/copy the weight per call.
            cand = k_tile
            while cand > 256 and input_dim % cand:
                cand -= 256
            if input_dim % cand == 0:
                k_tile = cand
            elif input_dim % 128 == 0:
                k_tile = 128
    k_tile = int(k_tile)
    if k_tile < input_dim:
        k_tile = max(128, _round_up(k_tile, 128))          # lane constraint on x tile
    if k_tile >= input_dim:
        k_tile = input_dim
        k_padded = input_dim
    else:
        k_padded = _round_up(input_dim, k_tile)
        if k_padded != input_dim:
            # TODO(synk): pre-pad weight/activations once at parameter-load time; this
            # per-call zero-pad costs an extra HBM pass over the weight + activations.
            x2d = jnp.pad(x2d, ((0, 0), (0, k_padded - input_dim)))
            weight = jnp.pad(weight, ((0, k_padded - input_dim), (0, 0)))
    num_k = k_padded // k_tile

    # ---- Row tiling: big tiles amortize per-grid-step overhead; NO tail padding
    #      (Pallas masks the partial edge block; rows are independent). ----
    row_tile = max(8, min(_round_up(int(row_tile), 8), _round_up(rows, 8)))
    if rows > 8:
        # Keep >= 2 row tiles so the "parallel" axis can split across v7x's two TensorCores.
        row_tile = min(row_tile, _round_up(_cdiv(rows, 2), 8))

    def vmem_needed(rt, single_buf):
        w_bufs = (1 if single_buf else 2) if num_k == 1 else 2
        const_bufs = 1 if single_buf else 2
        return (2 * rt * k_tile * x_itemsize                   # x tile (double-buffered)
                + 2 * rt * output_dim * res_itemsize           # residual tile
                + 2 * rt * output_dim * out_itemsize           # output tile
                + w_bufs * k_tile * output_dim * w_itemsize    # weight tile
                + const_bufs * 3 * output_dim * 4              # bias / gamma / beta
                + (rt * output_dim * 4 if num_k > 1 else 0))   # f32 accumulator scratch

    # Shrink the row tile until the working set fits comfortably (crucial on v7x's 64 MiB).
    while row_tile > 8 and vmem_needed(row_tile, True) > int(usable_vmem * 0.8):
        row_tile = max(8, _round_up(row_tile // 2, 8))
    num_row_tiles = _cdiv(rows, row_tile)

    # ---- Scheduler hint: true HBM traffic (weight re-streamed per row tile when K-tiled). ----
    w_passes = 1 if num_k == 1 else num_row_tiles
    cost = pl.CostEstimate(
        flops=2 * rows * input_dim * output_dim,
        transcendentals=0,
        bytes_accessed=(rows * input_dim * x_itemsize
                        + w_passes * input_dim * output_dim * w_itemsize
                        + rows * output_dim * res_itemsize
                        + rows * output_dim * out_itemsize),
    )

    def build(single_buf):
        needed = vmem_needed(row_tile, single_buf)
        vmem_limit = int(min(usable_vmem, max(32 << 20, int(needed * 1.5) + (2 << 20))))
        c_mode = pl.Buffered(1) if single_buf else None        # grid-invariant operands
        w_mode = c_mode if num_k == 1 else None                # weight varies along K if tiled

        def spec(shape, index_map, mode):
            if mode is None:
                return pl.BlockSpec(shape, index_map)
            return pl.BlockSpec(shape, index_map, pipeline_mode=mode)

        if num_k == 1:
            kernel = _self_output_fused_kernel
            grid = (num_row_tiles,)
            in_specs = [
                spec((row_tile, k_tile), lambda i: (i, 0), None),                 # x
                spec((k_tile, output_dim), lambda i: (0, 0), w_mode),             # W (resident)
                spec((1, output_dim), lambda i: (0, 0), c_mode),                  # bias
                spec((row_tile, output_dim), lambda i: (i, 0), None),             # residual
                spec((1, output_dim), lambda i: (0, 0), c_mode),                  # gamma
                spec((1, output_dim), lambda i: (0, 0), c_mode),                  # beta
            ]
            out_spec = pl.BlockSpec((row_tile, output_dim), lambda i: (i, 0))
            scratch = []
            dim_sem = ("parallel",)
        else:
            kernel = _self_output_ktiled_kernel
            grid = (num_row_tiles, num_k)
            in_specs = [
                spec((row_tile, k_tile), lambda i, k: (i, k), None),              # x
                spec((k_tile, output_dim), lambda i, k: (k, 0), None),            # W (K-tiled)
                spec((1, output_dim), lambda i, k: (0, 0), c_mode),               # bias
                spec((row_tile, output_dim), lambda i, k: (i, 0), None),          # residual
                spec((1, output_dim), lambda i, k: (0, 0), c_mode),               # gamma
                spec((1, output_dim), lambda i, k: (0, 0), c_mode),               # beta
            ]
            out_spec = pl.BlockSpec((row_tile, output_dim), lambda i, k: (i, 0))
            scratch = [pltpu.VMEM((row_tile, output_dim), jnp.float32)]
            dim_sem = ("parallel", "arbitrary")

        return pl.pallas_call(
            kernel,
            out_shape=jax.ShapeDtypeStruct((rows, output_dim), out_dtype),
            grid_spec=pltpu.PrefetchScalarGridSpec(
                num_scalar_prefetch=0,
                grid=grid,
                in_specs=in_specs,
                out_specs=out_spec,
                scratch_shapes=scratch,
            ),
            compiler_params=pltpu.CompilerParams(
                dimension_semantics=dim_sem,
                vmem_limit_bytes=vmem_limit,
            ),
            cost_estimate=cost,
        )

    try:
        out2d = build(True)(x2d, weight, b2d, res2d, g2d, beta2d)
    except Exception:
        # Compat fallback for JAX versions without single-buffer pipeline_mode support.
        # The fallback recomputes its own (double-buffered) vmem limit; if the failure was
        # unrelated, this second build will raise it rather than hide it.
        out2d = build(False)(x2d, weight, b2d, res2d, g2d, beta2d)

    return out2d.reshape(B, S, output_dim)


def _reference(hidden_states, input_tensor, weight, bias, gamma, beta):
    h = jnp.einsum("bsi,io->bso", hidden_states.astype(jnp.float32),
                   weight.astype(jnp.float32)) + bias.astype(jnp.float32)
    y = h + input_tensor.astype(jnp.float32)
    mean = jnp.mean(y, axis=-1, keepdims=True)
    var = jnp.mean((y - mean) ** 2, axis=-1, keepdims=True)
    return ((y - mean) * jax.lax.rsqrt(var + LN_EPS) * gamma.astype(jnp.float32)
            + beta.astype(jnp.float32))


if __name__ == "__main__":
    def make_case(key, B, S, din, dout, act_dtype=jnp.float32):
        ks = jax.random.split(key, 6)
        hs = jax.random.normal(ks[0], (B, S, din), jnp.float32).astype(act_dtype)
        res = jax.random.normal(ks[1], (B, S, dout), jnp.float32).astype(act_dtype)
        bound = 1.0 / (din ** 0.5)
        w = jax.random.uniform(ks[2], (din, dout), jnp.float32, -bound, bound).astype(act_dtype)
        b = jax.random.uniform(ks[3], (dout,), jnp.float32, -bound, bound)
        g = 1.0 + 0.1 * jax.random.normal(ks[4], (dout,), jnp.float32)
        bt = 0.1 * jax.random.normal(ks[5], (dout,), jnp.float32)
        return hs, res, w, b, g, bt

    key = jax.random.PRNGKey(0)
    cases = [
        # (B, S, input_dim, output_dim, act_dtype, kwargs, atol)
        (2, 8, 32, 32, jnp.float32, {}, 1e-4),                        # fused path, resident weight
        (3, 5, 32, 32, jnp.float32, {"row_tile": 16}, 1e-4),          # ragged rows -> masked edge block
        (2, 8, 256, 128, jnp.float32, {"k_tile": 128}, 1e-4),         # K-tiled accumulator path
        (2, 16, 128, 128, jnp.bfloat16, {}, 5e-2),                    # bf16 I/O (f32 accum + LN)
    ]
    for idx, (B, S, din, dout, dt, kwargs, atol) in enumerate(cases):
        key, sub = jax.random.split(key)
        hs, res, w, b, g, bt = make_case(sub, B, S, din, dout, dt)
        out = self_output_forward(hs, res, w, b, g, bt, **kwargs)
        out = jax.block_until_ready(out)
        ref = _reference(hs, res, w, b, g, bt)
        assert out.shape == (B, S, dout)
        assert jnp.allclose(out.astype(jnp.float32), ref, atol=atol, rtol=atol), \
            f"mismatch vs reference (case {idx})"

    print("KERNEL_OK")
</pallas_src>

<mosaic_0001>
module attributes {stable_mosaic.version = 11 : i64} {
  func.func @_self_output_fused_kernel(%arg0: i32, %arg1: memref<8x32xf32, #tpu.memory_space<vmem>>, %arg2: memref<32x32xf32, #tpu.memory_space<vmem>>, %arg3: memref<1x32xf32, #tpu.memory_space<vmem>>, %arg4: memref<8x32xf32, #tpu.memory_space<vmem>>, %arg5: memref<1x32xf32, #tpu.memory_space<vmem>>, %arg6: memref<1x32xf32, #tpu.memory_space<vmem>>, %arg7: memref<8x32xf32, #tpu.memory_space<vmem>>) attributes {dimension_semantics = [#tpu.dimension_semantics<parallel>], iteration_bounds = array<i64: 2>, scalar_prefetch = 0 : i64, scratch_operands = 0 : i64, tpu.core_type = #tpu.core_type<tc>, window_params = [{transform_indices = @transform_0, window_bounds = array<i64: 8, 32>}, {pipeline_mode = #tpu.pipeline_mode<synchronous>, transform_indices = @transform_1, window_bounds = array<i64: 32, 32>}, {pipeline_mode = #tpu.pipeline_mode<synchronous>, transform_indices = @transform_2, window_bounds = array<i64: 1, 32>}, {transform_indices = @transform_3, window_bounds = array<i64: 8, 32>}, {pipeline_mode = #tpu.pipeline_mode<synchronous>, transform_indices = @transform_4, window_bounds = array<i64: 1, 32>}, {pipeline_mode = #tpu.pipeline_mode<synchronous>, transform_indices = @transform_5, window_bounds = array<i64: 1, 32>}, {transform_indices = @transform_6, window_bounds = array<i64: 8, 32>}]} {
    %c0 = arith.constant 0 : index
    %c0_0 = arith.constant 0 : index
    %0 = vector.load %arg1[%c0, %c0_0] : memref<8x32xf32, #tpu.memory_space<vmem>>, vector<8x32xf32>
    %c0_1 = arith.constant 0 : index
    %c0_2 = arith.constant 0 : index
    %1 = vector.load %arg2[%c0_1, %c0_2] : memref<32x32xf32, #tpu.memory_space<vmem>>, vector<32x32xf32>
    %cst = arith.constant dense<0.000000e+00> : vector<8x32xf32>
    %2 = tpu.matmul %0, %1, %cst {dimension_numbers = #tpu.dot_dimension_numbers<[1], [0], [0], [1], [0, 0, 1, 1], [], []>} : vector<8x32xf32>, vector<32x32xf32>, vector<8x32xf32> -> vector<8x32xf32>
    %c0_3 = arith.constant 0 : index
    %c0_4 = arith.constant 0 : index
    %3 = vector.load %arg3[%c0_3, %c0_4] : memref<1x32xf32, #tpu.memory_space<vmem>>, vector<1x32xf32>
    %4 = vector.broadcast %3 : vector<1x32xf32> to vector<8x32xf32>
    %5 = arith.addf %2, %4 : vector<8x32xf32>
    %c0_5 = arith.constant 0 : index
    %c0_6 = arith.constant 0 : index
    %6 = vector.load %arg4[%c0_5, %c0_6] : memref<8x32xf32, #tpu.memory_space<vmem>>, vector<8x32xf32>
    %7 = arith.addf %5, %6 : vector<8x32xf32>
    %c0_7 = arith.constant 0 : index
    %c0_8 = arith.constant 0 : index
    %8 = vector.load %arg5[%c0_7, %c0_8] : memref<1x32xf32, #tpu.memory_space<vmem>>, vector<1x32xf32>
    %c0_9 = arith.constant 0 : index
    %c0_10 = arith.constant 0 : index
    %9 = vector.load %arg6[%c0_9, %c0_10] : memref<1x32xf32, #tpu.memory_space<vmem>>, vector<1x32xf32>
    %cst_11 = arith.constant dense<0.000000e+00> : vector<8xf32>
    %10 = vector.multi_reduction <add>, %7, %cst_11 [1] : vector<8x32xf32> to vector<8xf32>
    %11 = vector.shape_cast %10 : vector<8xf32> to vector<8x1xf32>
    %cst_12 = arith.constant 3.125000e-02 : f32
    %12 = vector.broadcast %cst_12 : f32 to vector<8x1xf32>
    %13 = arith.mulf %11, %12 : vector<8x1xf32>
    %14 = vector.broadcast %13 : vector<8x1xf32> to vector<8x32xf32>
    %15 = arith.subf %7, %14 : vector<8x32xf32>
    %16 = arith.mulf %15, %15 : vector<8x32xf32>
    %cst_13 = arith.constant dense<0.000000e+00> : vector<8xf32>
    %17 = vector.multi_reduction <add>, %16, %cst_13 [1] : vector<8x32xf32> to vector<8xf32>
    %18 = vector.shape_cast %17 : vector<8xf32> to vector<8x1xf32>
    %cst_14 = arith.constant 3.125000e-02 : f32
    %19 = vector.broadcast %cst_14 : f32 to vector<8x1xf32>
    %20 = arith.mulf %18, %19 : vector<8x1xf32>
    %cst_15 = arith.constant 9.99999974E-6 : f32
    %21 = vector.broadcast %cst_15 : f32 to vector<8x1xf32>
    %22 = arith.addf %20, %21 : vector<8x1xf32>
    %23 = math.rsqrt %22 : vector<8x1xf32>
    %24 = vector.broadcast %23 : vector<8x1xf32> to vector<8x32xf32>
    %25 = arith.mulf %15, %24 : vector<8x32xf32>
    %26 = vector.broadcast %8 : vector<1x32xf32> to vector<8x32xf32>
    %27 = arith.mulf %25, %26 : vector<8x32xf32>
    %28 = vector.broadcast %9 : vector<1x32xf32> to vector<8x32xf32>
    %29 = arith.addf %27, %28 : vector<8x32xf32>
    %c0_16 = arith.constant 0 : index
    %c0_17 = arith.constant 0 : index
    %30 = vector.load %arg7[%c0_16, %c0_17] : memref<8x32xf32, #tpu.memory_space<vmem>>, vector<8x32xf32>
    tpu.vector_store %arg7[%c0_16, %c0_17], %29 {strides = array<i32>} : memref<8x32xf32, #tpu.memory_space<vmem>>, vector<8x32xf32>,
    return
  }
  func.func @transform_0(%arg0: i32) -> (i32, i32) {
    %c0_i32 = arith.constant 0 : i32
    %c0_i32_0 = arith.constant 0 : i32
    return %arg0, %c0_i32 : i32, i32
  }
  func.func @transform_1(%arg0: i32) -> (i32, i32) {
    %c0_i32 = arith.constant 0 : i32
    %c0_i32_0 = arith.constant 0 : i32
    %c0_i32_1 = arith.constant 0 : i32
    return %c0_i32, %c0_i32_0 : i32, i32
  }
  func.func @transform_2(%arg0: i32) -> (i32, i32) {
    %c0_i32 = arith.constant 0 : i32
    %c0_i32_0 = arith.constant 0 : i32
    %c0_i32_1 = arith.constant 0 : i32
    return %c0_i32, %c0_i32_0 : i32, i32
  }
  func.func @transform_3(%arg0: i32) -> (i32, i32) {
    %c0_i32 = arith.constant 0 : i32
    %c0_i32_0 = arith.constant 0 : i32
    return %arg0, %c0_i32 : i32, i32
  }
  func.func @transform_4(%arg0: i32) -> (i32, i32) {
    %c0_i32 = arith.constant 0 : i32
    %c0_i32_0 = arith.constant 0 : i32
    %c0_i32_1 = arith.constant 0 : i32
    return %c0_i32, %c0_i32_0 : i32, i32
  }
  func.func @transform_5(%arg0: i32) -> (i32, i32) {
    %c0_i32 = arith.constant 0 : i32
    %c0_i32_0 = arith.constant 0 : i32
    %c0_i32_1 = arith.constant 0 : i32
    return %c0_i32, %c0_i32_0 : i32, i32
  }
  func.func @transform_6(%arg0: i32) -> (i32, i32) {
    %c0_i32 = arith.constant 0 : i32
    %c0_i32_0 = arith.constant 0 : i32
    return %arg0, %c0_i32 : i32, i32
  }
}

module attributes {stable_mosaic.version = 11 : i64} {
  func.func @_self_output_fused_kernel(%arg0: i32, %arg1: memref<8x32xf32, #tpu.memory_space<vmem>>, %arg2: memref<32x32xf32, #tpu.memory_space<vmem>>, %arg3: memref<1x32xf32, #tpu.memory_space<vmem>>, %arg4: memref<8x32xf32, #tpu.memory_space<vmem>>, %arg5: memref<1x32xf32, #tpu.memory_space<vmem>>, %arg6: memref<1x32xf32, #tpu.memory_space<vmem>>, %arg7: memref<8x32xf32, #tpu.memory_space<vmem>>) attributes {dimension_semantics = [#tpu.dimension_semantics<parallel>], iteration_bounds = array<i64: 2>, scalar_prefetch = 0 : i64, scratch_operands = 0 : i64, tpu.core_type = #tpu.core_type<tc>, window_params = [{transform_indices = @transform_0, window_bounds = array<i64: 8, 32>}, {pipeline_mode = #tpu.pipeline_mode<synchronous>, transform_indices = @transform_1, window_bounds = array<i64: 32, 32>}, {pipeline_mode = #tpu.pipeline_mode<synchronous>, transform_indices = @transform_2, window_bounds = array<i64: 1, 32>}, {transform_indices = @transform_3, window_bounds = array<i64: 8, 32>}, {pipeline_mode = #tpu.pipeline_mode<synchronous>, transform_indices = @transform_4, window_bounds = array<i64: 1, 32>}, {pipeline_mode = #tpu.pipeline_mode<synchronous>, transform_indices = @transform_5, window_bounds = array<i64: 1, 32>}, {transform_indices = @transform_6, window_bounds = array<i64: 8, 32>}]} {
    %c0 = arith.constant 0 : index
    %c0_0 = arith.constant 0 : index
    %0 = vector.load %arg1[%c0, %c0_0] : memref<8x32xf32, #tpu.memory_space<vmem>>, vector<8x32xf32>
    %c0_1 = arith.constant 0 : index
    %c0_2 = arith.constant 0 : index
    %1 = vector.load %arg2[%c0_1, %c0_2] : memref<32x32xf32, #tpu.memory_space<vmem>>, vector<32x32xf32>
    %cst = arith.constant dense<0.000000e+00> : vector<8x32xf32>
    %2 = tpu.matmul %0, %1, %cst {dimension_numbers = #tpu.dot_dimension_numbers<[1], [0], [0], [1], [0, 0, 1, 1], [], []>} : vector<8x32xf32>, vector<32x32xf32>, vector<8x32xf32> -> vector<8x32xf32>
    %c0_3 = arith.constant 0 : index
    %c0_4 = arith.constant 0 : index
    %3 = vector.load %arg3[%c0_3, %c0_4] : memref<1x32xf32, #tpu.memory_space<vmem>>, vector<1x32xf32>
    %4 = vector.broadcast %3 : vector<1x32xf32> to vector<8x32xf32>
    %5 = arith.addf %2, %4 : vector<8x32xf32>
    %c0_5 = arith.constant 0 : index
    %c0_6 = arith.constant 0 : index
    %6 = vector.load %arg4[%c0_5, %c0_6] : memref<8x32xf32, #tpu.memory_space<vmem>>, vector<8x32xf32>
    %7 = arith.addf %5, %6 : vector<8x32xf32>
    %c0_7 = arith.constant 0 : index
    %c0_8 = arith.constant 0 : index
    %8 = vector.load %arg5[%c0_7, %c0_8] : memref<1x32xf32, #tpu.memory_space<vmem>>, vector<1x32xf32>
    %c0_9 = arith.constant 0 : index
    %c0_10 = arith.constant 0 : index
    %9 = vector.load %arg6[%c0_9, %c0_10] : memref<1x32xf32, #tpu.memory_space<vmem>>, vector<1x32xf32>
    %cst_11 = arith.constant dense<0.000000e+00> : vector<8xf32>
    %10 = vector.multi_reduction <add>, %7, %cst_11 [1] : vector<8x32xf32> to vector<8xf32>
    %11 = vector.shape_cast %10 : vector<8xf32> to vector<8x1xf32>
    %cst_12 = arith.constant 3.125000e-02 : f32
    %12 = vector.broadcast %cst_12 : f32 to vector<8x1xf32>
    %13 = arith.mulf %11, %12 : vector<8x1xf32>
    %14 = vector.broadcast %13 : vector<8x1xf32> to vector<8x32xf32>
    %15 = arith.subf %7, %14 : vector<8x32xf32>
    %16 = arith.mulf %15, %15 : vector<8x32xf32>
    %cst_13 = arith.constant dense<0.000000e+00> : vector<8xf32>
    %17 = vector.multi_reduction <add>, %16, %cst_13 [1] : vector<8x32xf32> to vector<8xf32>
    %18 = vector.shape_cast %17 : vector<8xf32> to vector<8x1xf32>
    %cst_14 = arith.constant 3.125000e-02 : f32
    %19 = vector.broadcast %cst_14 : f32 to vector<8x1xf32>
    %20 = arith.mulf %18, %19 : vector<8x1xf32>
    %cst_15 = arith.constant 9.99999974E-6 : f32
    %21 = vector.broadcast %cst_15 : f32 to vector<8x1xf32>
    %22 = arith.addf %20, %21 : vector<8x1xf32>
    %23 = math.rsqrt %22 : vector<8x1xf32>
    %24 = vector.broadcast %23 : vector<8x1xf32> to vector<8x32xf32>
    %25 = arith.mulf %15, %24 : vector<8x32xf32>
    %26 = vector.broadcast %8 : vector<1x32xf32> to vector<8x32xf32>
    %27 = arith.mulf %25, %26 : vector<8x32xf32>
    %28 = vector.broadcast %9 : vector<1x32xf32> to vector<8x32xf32>
    %29 = arith.addf %27, %28 : vector<8x32xf32>
    %c0_16 = arith.constant 0 : index
    %c0_17 = arith.constant 0 : index
    %30 = vector.load %arg7[%c0_16, %c0_17] : memref<8x32xf32, #tpu.memory_space<vmem>>, vector<8x32xf32>
    tpu.vector_store %arg7[%c0_16, %c0_17], %29 {strides = array<i32>} : memref<8x32xf32, #tpu.memory_space<vmem>>, vector<8x32xf32>,
    return
  }
  func.func @transform_0(%arg0: i32) -> (i32, i32) {
    %c0_i32 = arith.constant 0 : i32
    %c0_i32_0 = arith.constant 0 : i32
    return %arg0, %c0_i32 : i32, i32
  }
  func.func @transform_1(%arg0: i32) -> (i32, i32) {
    %c0_i32 = arith.constant 0 : i32
    %c0_i32_0 = arith.constant 0 : i32
    %c0_i32_1 = arith.constant 0 : i32
    return %c0_i32, %c0_i32_0 : i32, i32
  }
  func.func @transform_2(%arg0: i32) -> (i32, i32) {
    %c0_i32 = arith.constant 0 : i32
    %c0_i32_0 = arith.constant 0 : i32
    %c0_i32_1 = arith.constant 0 : i32
    return %c0_i32, %c0_i32_0 : i32, i32
  }
  func.func @transform_3(%arg0: i32) -> (i32, i32) {
    %c0_i32 = arith.constant 0 : i32
    %c0_i32_0 = arith.constant 0 : i32
    return %arg0, %c0_i32 : i32, i32
  }
  func.func @transform_4(%arg0: i32) -> (i32, i32) {
    %c0_i32 = arith.constant 0 : i32
    %c0_i32_0 = arith.constant 0 : i32
    %c0_i32_1 = arith.constant 0 : i32
    return %c0_i32, %c0_i32_0 : i32, i32
  }
  func.func @transform_5(%arg0: i32) -> (i32, i32) {
    %c0_i32 = arith.constant 0 : i32
    %c0_i32_0 = arith.constant 0 : i32
    %c0_i32_1 = arith.constant 0 : i32
    return %c0_i32, %c0_i32_0 : i32, i32
  }
  func.func @transform_6(%arg0: i32) -> (i32, i32) {
    %c0_i32 = arith.constant 0 : i32
    %c0_i32_0 = arith.constant 0 : i32
    return %arg0, %c0_i32 : i32, i32
  }
}

</mosaic_0001>

<llo_original>
// kernel: tpu_custom_call.1
$region0: #{tpu_custom_call.1}
  #allocation0 [shape = 'u32[]', space=smem, size = 0x4, offset = 0x4, fixed_abs, tag = 'smem constant byte address 0x4 - core index']
  #allocation1 [shape = 'u32[72,128]{1,0:T(1,128)}', space=vmem, size = 0x9000, scoped, tag = 'internal scratch']
  %s0 = inlined_call_operand.hbm [shape: f32[16,32], index: 0, kind: input, shape index: {}]
  %s1 = inlined_call_operand.hbm [shape: f32[32,32], index: 1, kind: input, shape index: {}]
  %s2 = inlined_call_operand.vmem [shape: f32[1,32], index: 2, kind: input, shape index: {}]
  %s3 = inlined_call_operand.hbm [shape: f32[16,32], index: 3, kind: input, shape index: {}]
  %s4 = inlined_call_operand.vmem [shape: f32[1,32], index: 4, kind: input, shape index: {}]
  %s5 = inlined_call_operand.vmem [shape: f32[1,32], index: 5, kind: input, shape index: {}]
  %s6 = inlined_call_operand.hbm [shape: f32[16,32], index: 6, kind: output, shape index: {}]
  %s7 = sld [smem:[#allocation0]]
  $region69: #{tpu_custom_call.1} parent=0
    _
  %s9 = ssub.s32 1, %s7
  %s10 = scalar_select 0, %s9, %s7
  $region1: #{tpu_custom_call.1} parent=0
    #allocation2 [shape = 'u8[8192]{0}', space=vmem, size = 0x2000, scoped, tag = 'input window, operand 0']
    #allocation3 [shape = 's32[2]{0}', space=sflag, size = 0x8, scoped, tag = 'scoped memory for tpu_custom_call.1']
    #allocation4 [shape = 's32[2]{0}', space=sflag, size = 0x8, scoped, tag = 'scoped memory for tpu_custom_call.1']
    #allocation5 [shape = 'u8[16384]{0}', space=vmem, size = 0x4000, scoped, tag = 'input window, operand 1, single buffered']
    #allocation6 [shape = 's32[1]{0}', space=sflag, size = 0x4, scoped, tag = 'scoped memory for tpu_custom_call.1']
    #allocation7 [shape = 'u8[8192]{0}', space=vmem, size = 0x2000, scoped, tag = 'input window, operand 3']
    #allocation8 [shape = 'u8[8192]{0}', space=vmem, size = 0x2000, scoped, tag = 'output window, operand 0']
    %11 = vsyncpa [#allocation3], 0
    %s12 = scalar_lea.sflag [#allocation3], 1
    %13 = vsyncpa %s12, 0
    %14 = vsyncpa [#allocation6], 0
    %15 = vsyncpa [#allocation4], 0
    %s16 = scalar_lea.sflag [#allocation4], 1
    %17 = vsyncpa %s16, 0
    loop: start=0, step=1, limit=4
    $region2: #{tpu_custom_call.1} parent=1 // loop_pre_header
      _
    $region3: #{tpu_custom_call.1} parent=1 // loop_header
      %s19 = sphi 0, %s23
      %p20 = scmp.ge.s32.totalorder %s19, 4
      %s29 = sphi 0, %s31
      %s32 = sphi 0, %s29
      %s33 = sphi 0, %s32
      %s49 = sphi 0, %s33
      %s53 = sphi 0, %s53
      %s55 = sphi 0, %s53
      %s56 = sphi 0, %s55
      %s70 = sphi 0, %s56
      %s74 = sphi 0, %s74
      %s76 = sphi 0, %s74
      %s77 = sphi 0, %s76
      %s91 = sphi 0, %s77
      %s97 = sphi 0, %s99
      %s100 = sphi 0, %s97
      %s101 = sphi 0, %s100
      %s117 = sphi 0, %s101
      %s121 = sphi 0, %s121
      %s123 = sphi 0, %s121
      %s124 = sphi 0, %s123
      %s138 = sphi 0, %s124
      %s142 = sphi 0, %s142
      %s144 = sphi 0, %s142
      %s145 = sphi 0, %s144
      %s159 = sphi 0, %s145
      %s165 = sphi 0, %s167
      %s168 = sphi 0, %s165
      %s169 = sphi 0, %s168
      %s185 = sphi 0, %s169
    $region4: #{tpu_custom_call.1} parent=1 // loop_header_branch
      %22 = sbr.rel (%p20) target = $region8
    $region5: #{tpu_custom_call.1} parent=1 // loop_body
      %s24 = ssub.s32 %s19, 1
      %s25 = ssub.s32 %s19, 2
      %s26 = sadd.s32 %s19, 1
      %s27 = ssub.s32 %s19, %s26
      %p28 = scmp.eq.s32.totalorder %s27, 0
      %s30 = sadd.s32 %s29, 1
      %s31 = scalar_select %p28, %s29, %s30
      %p34 = pneg %p28
      %p35 = scmp.eq.s32.totalorder %s19, 1
      %p36 = por %p34, %p35
      %p37 = scmp.ne.s32.totalorder %s29, %s32
      %p38 = scmp.eq.s32.totalorder %s19, 0
      %p39 = por %p37, %p38
      %p40 = scmp.ne.s32.totalorder %s29, %s32
      %p41 = scmp.eq.s32.totalorder %s24, 1
      %p42 = por %p40, %p41
      %p43 = scmp.ne.s32.totalorder %s32, %s33
      %p44 = scmp.eq.s32.totalorder %s24, 0
      %p45 = por %p43, %p44
      %p46 = scmp.ne.s32.totalorder %s32, %s33
      %p47 = scmp.eq.s32.totalorder %s25, 1
      %p48 = por %p46, %p47
      %p50 = scmp.ne.s32.totalorder %s33, %s49
      %p51 = scmp.eq.s32.totalorder %s25, 0
      %p52 = por %p50, %p51
      %s54 = sadd.s32 %s53, 1
      %p57 = scmp.eq.s32.totalorder %s19, 1
      %p58 = scmp.ne.s32.totalorder %s53, %s55
      %p59 = scmp.eq.s32.totalorder %s19, 0
      %p60 = por %p58, %p59
      %p61 = scmp.ne.s32.totalorder %s53, %s55
      %p62 = scmp.eq.s32.totalorder %s24, 1
      %p63 = por %p61, %p62
      %p64 = scmp.ne.s32.totalorder %s55, %s56
      %p65 = scmp.eq.s32.totalorder %s24, 0
      %p66 = por %p64, %p65
      %p67 = scmp.ne.s32.totalorder %s55, %s56
      %p68 = scmp.eq.s32.totalorder %s25, 1
      %p69 = por %p67, %p68
      %p71 = scmp.ne.s32.totalorder %s56, %s70
      %p72 = scmp.eq.s32.totalorder %s25, 0
      %p73 = por %p71, %p72
      %s75 = sadd.s32 %s74, 1
      %p78 = scmp.eq.s32.totalorder %s19, 1
      %p79 = scmp.ne.s32.totalorder %s74, %s76
      %p80 = scmp.eq.s32.totalorder %s19, 0
      %p81 = por %p79, %p80
      %p82 = scmp.ne.s32.totalorder %s74, %s76
      %p83 = scmp.eq.s32.totalorder %s24, 1
      %p84 = por %p82, %p83
      %p85 = scmp.ne.s32.totalorder %s76, %s77
      %p86 = scmp.eq.s32.totalorder %s24, 0
      %p87 = por %p85, %p86
      %p88 = scmp.ne.s32.totalorder %s76, %s77
      %p89 = scmp.eq.s32.totalorder %s25, 1
      %p90 = por %p88, %p89
      %p92 = scmp.ne.s32.totalorder %s77, %s91
      %p93 = scmp.eq.s32.totalorder %s25, 0
      %p94 = por %p92, %p93
      %s95 = ssub.s32 %s19, %s26
      %p96 = scmp.eq.s32.totalorder %s95, 0
      %s98 = sadd.s32 %s97, 1
      %s99 = scalar_select %p96, %s97, %s98
      %p102 = pneg %p96
      %p103 = scmp.eq.s32.totalorder %s19, 1
      %p104 = por %p102, %p103
      %p105 = scmp.ne.s32.totalorder %s97, %s100
      %p106 = scmp.eq.s32.totalorder %s19, 0
      %p107 = por %p105, %p106
      %p108 = scmp.ne.s32.totalorder %s97, %s100
      %p109 = scmp.eq.s32.totalorder %s24, 1
      %p110 = por %p108, %p109
      %p111 = scmp.ne.s32.totalorder %s100, %s101
      %p112 = scmp.eq.s32.totalorder %s24, 0
      %p113 = por %p111, %p112
      %p114 = scmp.ne.s32.totalorder %s100, %s101
      %p115 = scmp.eq.s32.totalorder %s25, 1
      %p116 = por %p114, %p115
      %p118 = scmp.ne.s32.totalorder %s101, %s117
      %p119 = scmp.eq.s32.totalorder %s25, 0
      %p120 = por %p118, %p119
      %s122 = sadd.s32 %s121, 1
      %p125 = scmp.eq.s32.totalorder %s19, 1
      %p126 = scmp.ne.s32.totalorder %s121, %s123
      %p127 = scmp.eq.s32.totalorder %s19, 0
      %p128 = por %p126, %p127
      %p129 = scmp.ne.s32.totalorder %s121, %s123
      %p130 = scmp.eq.s32.totalorder %s24, 1
      %p131 = por %p129, %p130
      %p132 = scmp.ne.s32.totalorder %s123, %s124
      %p133 = scmp.eq.s32.totalorder %s24, 0
      %p134 = por %p132, %p133
      %p135 = scmp.ne.s32.totalorder %s123, %s124
      %p136 = scmp.eq.s32.totalorder %s25, 1
      %p137 = por %p135, %p136
      %p139 = scmp.ne.s32.totalorder %s124, %s138
      %p140 = scmp.eq.s32.totalorder %s25, 0
      %p141 = por %p139, %p140
      %s143 = sadd.s32 %s142, 1
      %p146 = scmp.eq.s32.totalorder %s19, 1
      %p147 = scmp.ne.s32.totalorder %s142, %s144
      %p148 = scmp.eq.s32.totalorder %s19, 0
      %p149 = por %p147, %p148
      %p150 = scmp.ne.s32.totalorder %s142, %s144
      %p151 = scmp.eq.s32.totalorder %s24, 1
      %p152 = por %p150, %p151
      %p153 = scmp.ne.s32.totalorder %s144, %s145
      %p154 = scmp.eq.s32.totalorder %s24, 0
      %p155 = por %p153, %p154
      %p156 = scmp.ne.s32.totalorder %s144, %s145
      %p157 = scmp.eq.s32.totalorder %s25, 1
      %p158 = por %p156, %p157
      %p160 = scmp.ne.s32.totalorder %s145, %s159
      %p161 = scmp.eq.s32.totalorder %s25, 0
      %p162 = por %p160, %p161
      %s163 = ssub.s32 %s19, %s26
      %p164 = scmp.eq.s32.totalorder %s163, 0
      %s166 = sadd.s32 %s165, 1
      %s167 = scalar_select %p164, %s165, %s166
      %p170 = pneg %p164
      %p171 = scmp.eq.s32.totalorder %s19, 1
      %p172 = por %p170, %p171
      %p173 = scmp.ne.s32.totalorder %s165, %s168
      %p174 = scmp.eq.s32.totalorder %s19, 0
      %p175 = por %p173, %p174
      %p176 = scmp.ne.s32.totalorder %s165, %s168
      %p177 = scmp.eq.s32.totalorder %s24, 1
      %p178 = por %p176, %p177
      %p179 = scmp.ne.s32.totalorder %s168, %s169
      %p180 = scmp.eq.s32.totalorder %s24, 0
      %p181 = por %p179, %p180
      %p182 = scmp.ne.s32.totalorder %s168, %s169
      %p183 = scmp.eq.s32.totalorder %s25, 1
      %p184 = por %p182, %p183
      %p186 = scmp.ne.s32.totalorder %s169, %s185
      %p187 = scmp.eq.s32.totalorder %s25, 0
      %p188 = por %p186, %p187
      %p189 = scmp.le.s32.totalorder 1, %s19
      %p190 = scmp.lt.s32.totalorder %s19, 3
      %p191 = pnand %p189, %p190
      %p192 = pneg %p191
      // Predicated region
      $region9: #{tpu_custom_call.1} parent=5 // pred_check
        _
      $region10: #{tpu_custom_call.1} parent=5 // pred_check_branch
        %194 = sbr.rel (%p191) target = $region12
      $region11: #{tpu_custom_call.1} parent=5 // pred_region
        %s195 = ssub.s32 %s19, 1
        // Predicated region
        $region13: #{tpu_custom_call.1} parent=11 // pred_check
          %p196 = pneg %p66
        $region14: #{tpu_custom_call.1} parent=11 // pred_check_branch
          %198 = sbr.rel (%p196) target = $region16
        $region15: #{tpu_custom_call.1} parent=11 // pred_region
          %200 = vsyncadd [#allocation6], 0
          %s201 = sshll.u32 %s1, 4
          %s202 = int_to_ptr.hbm [resolvable:$true] %s201
          %s203 = sshll.u32 [#allocation5], 4
          %s204 = int_to_ptr.vmem [resolvable:$true] %s203
          %209 = dma.hbm_to_vmem [thread:$0]  %s202, 512, %s204, [#allocation6], 128, 128, 8
        $region16: #{tpu_custom_call.1} parent=11 // pred_fallthru
          _
        // Predicated region
        $region17: #{tpu_custom_call.1} parent=11 // pred_check
          %p210 = pneg %p87
        $region18: #{tpu_custom_call.1} parent=11 // pred_check_branch
          %212 = sbr.rel (%p210) target = $region20
        $region19: #{tpu_custom_call.1} parent=11 // pred_region
          _
        $region20: #{tpu_custom_call.1} parent=11 // pred_fallthru
          _
        // Predicated region
        $region21: #{tpu_custom_call.1} parent=11 // pred_check
          %p213 = pneg %p134
        $region22: #{tpu_custom_call.1} parent=11 // pred_check_branch
          %215 = sbr.rel (%p213) target = $region24
        $region23: #{tpu_custom_call.1} parent=11 // pred_region
          _
        $region24: #{tpu_custom_call.1} parent=11 // pred_fallthru
          _
        // Predicated region
        $region25: #{tpu_custom_call.1} parent=11 // pred_check
          %p216 = pneg %p155
        $region26: #{tpu_custom_call.1} parent=11 // pred_check_branch
          %218 = sbr.rel (%p216) target = $region28
        $region27: #{tpu_custom_call.1} parent=11 // pred_region
          _
        $region28: #{tpu_custom_call.1} parent=11 // pred_fallthru
          _
      $region12: #{tpu_custom_call.1} parent=5 // pred_fallthru
        _
      %p219 = scmp.lt.s32.totalorder %s19, 2
      // Predicated region
      $region29: #{tpu_custom_call.1} parent=5 // pred_check
        %p220 = pneg %p219
      $region30: #{tpu_custom_call.1} parent=5 // pred_check_branch
        %222 = sbr.rel (%p220) target = $region32
      $region31: #{tpu_custom_call.1} parent=5 // pred_region
        // Predicated region
        $region33: #{tpu_custom_call.1} parent=31 // pred_check
          %p223 = pneg %p39
        $region34: #{tpu_custom_call.1} parent=31 // pred_check_branch
          %225 = sbr.rel (%p223) target = $region36
        $region35: #{tpu_custom_call.1} parent=31 // pred_region
          %s226 = sand.u32 %s19, 1
          %s227 = scalar_lea.sflag [#allocation3], %s226
          %s228 = sand.u32 %s29, 1
          %s229 = smul.addr %s228, 8
          %s230 = scalar_lea.vmem [#allocation2], %s229
          %232 = vsyncadd %s227, 0
          %s233 = smul.addr %s19, 8
          %s234 = scalar_lea.hbm %s0, %s233
          %s236 = sshll.u32 %s234, 4
          %s237 = int_to_ptr.hbm [resolvable:$true] %s236
          %s238 = sshll.u32 %s230, 4
          %s239 = int_to_ptr.vmem [resolvable:$true] %s238
          %241 = dma.hbm_to_vmem [thread:$0]  %s237, 128, %s239, %s227
        $region36: #{tpu_custom_call.1} parent=31 // pred_fallthru
          _
        // Predicated region
        $region37: #{tpu_custom_call.1} parent=31 // pred_check
          %p242 = pneg %p107
        $region38: #{tpu_custom_call.1} parent=31 // pred_check_branch
          %244 = sbr.rel (%p242) target = $region40
        $region39: #{tpu_custom_call.1} parent=31 // pred_region
          %s245 = sand.u32 %s19, 1
          %s246 = scalar_lea.sflag [#allocation3], %s245
          %s247 = sand.u32 %s97, 1
          %s248 = smul.addr %s247, 8
          %s249 = scalar_lea.vmem [#allocation7], %s248
          %251 = vsyncadd %s246, 0
          %s252 = smul.addr %s19, 8
          %s253 = scalar_lea.hbm %s3, %s252
          %s255 = sshll.u32 %s253, 4
          %s256 = int_to_ptr.hbm [resolvable:$true] %s255
          %s257 = sshll.u32 %s249, 4
          %s258 = int_to_ptr.vmem [resolvable:$true] %s257
          %260 = dma.hbm_to_vmem [thread:$0]  %s256, 128, %s258, %s246
        $region40: #{tpu_custom_call.1} parent=31 // pred_fallthru
          _
      $region32: #{tpu_custom_call.1} parent=5 // pred_fallthru
        _
      %p261 = scmp.le.s32.totalorder 1, %s19
      %p262 = scmp.lt.s32.totalorder %s19, 3
      %p263 = pnand %p261, %p262
      %p264 = pneg %p263
      // Predicated region
      $region41: #{tpu_custom_call.1} parent=5 // pred_check
        _
      $region42: #{tpu_custom_call.1} parent=5 // pred_check_branch
        %266 = sbr.rel (%p263) target = $region44
      $region43: #{tpu_custom_call.1} parent=5 // pred_region
        %s267 = ssub.s32 %s19, 1
        %s268 = sand.u32 %s24, 1
        %s269 = scalar_lea.sflag [#allocation3], %s268
        %s270 = sand.u32 %s32, 1
        %s271 = smul.addr %s270, 8
        %s272 = scalar_lea.vmem [#allocation2], %s271
        // Predicated region
        $region45: #{tpu_custom_call.1} parent=43 // pred_check
          %p273 = pneg %p45
        $region46: #{tpu_custom_call.1} parent=43 // pred_check_branch
          %275 = sbr.rel (%p273) target = $region48
        $region47: #{tpu_custom_call.1} parent=43 // pred_region
          %277 = dma.done %s269, 128
        $region48: #{tpu_custom_call.1} parent=43 // pred_fallthru
          _
        // Predicated region
        $region49: #{tpu_custom_call.1} parent=43 // pred_check
          %p278 = pneg %p66
        $region50: #{tpu_custom_call.1} parent=43 // pred_check_branch
          %280 = sbr.rel (%p278) target = $region52
        $region51: #{tpu_custom_call.1} parent=43 // pred_region
          %282 = dma.done [#allocation6], 512
        $region52: #{tpu_custom_call.1} parent=43 // pred_fallthru
          _
        %s283 = sand.u32 %s24, 1
        %s284 = scalar_lea.sflag [#allocation3], %s283
        %s285 = sand.u32 %s100, 1
        %s286 = smul.addr %s285, 8
        %s287 = scalar_lea.vmem [#allocation7], %s286
        // Predicated region
        $region53: #{tpu_custom_call.1} parent=43 // pred_check
          %p288 = pneg %p113
        $region54: #{tpu_custom_call.1} parent=43 // pred_check_branch
          %290 = sbr.rel (%p288) target = $region56
        $region55: #{tpu_custom_call.1} parent=43 // pred_region
          %292 = dma.done %s284, 128
        $region56: #{tpu_custom_call.1} parent=43 // pred_fallthru
          _
        %s293 = sand.u32 %s24, 1
        %s294 = scalar_lea.sflag [#allocation3], %s293
        %s295 = sand.u32 %s32, 1
        %s296 = smul.addr %s295, 8
        %s297 = scalar_lea.vmem [#allocation2], %s296
        %p298 = pneg %p45
        %p299 = pneg %p42
        %p300 = pneg %p66
        %p301 = pneg %p63
        %p302 = pneg %p87
        %p303 = pneg %p84
        %s304 = sand.u32 %s24, 1
        %s305 = scalar_lea.sflag [#allocation3], %s304
        %s306 = sand.u32 %s100, 1
        %s307 = smul.addr %s306, 8
        %s308 = scalar_lea.vmem [#allocation7], %s307
        %p309 = pneg %p113
        %p310 = pneg %p110
        %p311 = pneg %p134
        %p312 = pneg %p131
        %p313 = pneg %p155
        %p314 = pneg %p152
        %p315 = pneg %p181
        %p316 = pneg %p178
        %s317 = sand.u32 %s168, 1
        %s318 = scalar_lea.sflag [#allocation4], %s317
        %s319 = sand.u32 %s168, 1
        %s320 = smul.addr %s319, 8
        %s321 = scalar_lea.vmem [#allocation8], %s320
        %v322 = vld [vmem:[%s272] sm:$0xff]
        %v323 = vld [vmem:[#allocation5] sm:$0xff]
        %v324 = vld [vmem:[#allocation5 + $0x8] sm:$0xff]
        %v325 = vld [vmem:[#allocation5 + $0x10] sm:$0xff]
        %v326 = vld [vmem:[#allocation5 + $0x18] sm:$0xff]
        %v327 = vld [vmem:[%s2] sm:$0x1]
        %v329 = vperm.slane %v327, 0
        %vm331 = vcmask 261120
        %v333 = vsel %vm331, %v322, 0
        %335 = vmatpush.msra.mxu0 0.0
        %336 = vmatpush.msra.mxu0 0.0
        %337 = vmatpush.msra.mxu0 0.0
        %338 = vmatpush.msra.mxu0 0.0
        %339 = vmatpush.msra.mxu0 0.0
        %340 = vmatpush.msra.mxu0 0.0
        %341 = vmatpush.msra.mxu0 0.0
        %342 = vmatpush.msra.mxu0 0.0
        %343 = vmatpush.msra.mxu0 0.0
        %344 = vmatpush.msra.mxu0 0.0
        %345 = vmatpush.msra.mxu0 0.0
        %346 = vmatpush.msra.mxu0 0.0
        %347 = vmatpush.msra.mxu0 %v326
        %348 = vmatpush.msra.mxu0 %v325
        %349 = vmatpush.msra.mxu0 %v324
        %350 = vmatpush.msra.mxu0 %v323
        %351 = vmatmul.f32.gmra.mxu0 %v333
        %v352 = vpop.f32.mrf.mxu0
        %v353 = vadd.f32 %v329, %v352
        %354 = vdwg.mxu0
        %v355 = vld [vmem:[%s287] sm:$0xff]
        %v356 = vadd.f32 %v353, %v355
        %v357 = vld [vmem:[%s4] sm:$0x1]
        %v358 = vld [vmem:[%s5] sm:$0x1]
        %v359 = vsel %vm331, %v356, 0.0
        %360 = vadd.xlane.f32.xlu0 %v359
        %v361 = vpop.xlane.xlu0 %360
        %v362 = vmul.f32 %v361, 0.03125
        %v363 = vsub.f32 %v356, %v362
        %v364 = vmul.f32 %v363, %v363
        %v365 = vsel %vm331, %v364, 0.0
        %366 = vadd.xlane.f32.xlu0 %v365
        %v367 = vpop.xlane.xlu0 %366
        %v368 = vmul.f32 %v367, 0.03125
        %v369 = vadd.f32 %v368, 1e-05
        %v370 = vrsqrt.pop %v369
        %v371 = vmul.f32 %v370, %v369
        %v372 = vmul.f32 %v371, %v370
        %v373 = vmul.f32 0.5, %v372
        %v374 = vsub.f32 1.5, %v373
        %v375 = vmul.f32 %v370, %v374
        %vm376 = vweird.f32 %v369
        %vm377 = vweird.f32 %v370
        %vm378 = vmor %vm376, %vm377
        %v379 = vsel %vm378, %v370, %v375
        %v380 = vmul.f32 %v363, %v379
        %v382 = vperm.slane %v357, 0
        %v384 = vmul.f32 %v380, %v382
        %v386 = vperm.slane %v358, 0
        %v388 = vadd.f32 %v384, %v386
        %389 = vst.msk [vmem:[%s321] sm:$0xff] %vm331, %v388
        %s390 = sand.u32 %s168, 1
        %s391 = scalar_lea.sflag [#allocation4], %s390
        %s392 = sand.u32 %s168, 1
        %s393 = smul.addr %s392, 8
        %s394 = scalar_lea.vmem [#allocation8], %s393
        // Predicated region
        $region57: #{tpu_custom_call.1} parent=43 // pred_check
          %p395 = pneg %p178
        $region58: #{tpu_custom_call.1} parent=43 // pred_check_branch
          %397 = sbr.rel (%p395) target = $region60
        $region59: #{tpu_custom_call.1} parent=43 // pred_region
          %399 = vsyncadd %s391, 0
          %s400 = smul.addr %s24, 8
          %s401 = scalar_lea.hbm %s6, %s400
          %s403 = sshll.u32 %s394, 4
          %s404 = int_to_ptr.vmem [resolvable:$true] %s403
          %s405 = sshll.u32 %s401, 4
          %s406 = int_to_ptr.hbm [resolvable:$true] %s405
          %408 = dma.vmem_to_hbm [thread:$0]  %s404, 128, %s406, %s391
        $region60: #{tpu_custom_call.1} parent=43 // pred_fallthru
          _
      $region44: #{tpu_custom_call.1} parent=5 // pred_fallthru
        _
      %p409 = scmp.le.s32.totalorder 2, %s19
      // Predicated region
      $region61: #{tpu_custom_call.1} parent=5 // pred_check
        %p410 = pneg %p409
      $region62: #{tpu_custom_call.1} parent=5 // pred_check_branch
        %412 = sbr.rel (%p410) target = $region64
      $region63: #{tpu_custom_call.1} parent=5 // pred_region
        %s413 = ssub.s32 %s19, 2
        // Predicated region
        $region65: #{tpu_custom_call.1} parent=63 // pred_check
          %p414 = pneg %p184
        $region66: #{tpu_custom_call.1} parent=63 // pred_check_branch
          %416 = sbr.rel (%p414) target = $region68
        $region67: #{tpu_custom_call.1} parent=63 // pred_region
          %s417 = sand.u32 %s169, 1
          %s418 = scalar_lea.sflag [#allocation4], %s417
          %s419 = sand.u32 %s169, 1
          %s420 = smul.addr %s419, 8
          %s421 = scalar_lea.vmem [#allocation8], %s420
          %423 = dma.done %s418, 128
        $region68: #{tpu_custom_call.1} parent=63 // pred_fallthru
          _
      $region64: #{tpu_custom_call.1} parent=5 // pred_fallthru
        _
    $region6: #{tpu_custom_call.1} parent=1 // loop_footer
      %s23 = sadd.s32 1, %s19
    $region7: #{tpu_custom_call.1} parent=1 // loop_footer_branch
      %18 = sbr.rel target = $region3
    $region8: #{tpu_custom_call.1} parent=1 // loop_exit
      _
    %424 = vsyncpa [#allocation3], 1
    %s425 = scalar_lea.sflag [#allocation3], 1
    %426 = vsyncpa %s425, 1
    %427 = vsyncpa [#allocation6], 1
    %428 = vsyncpa [#allocation4], 1
    %s429 = scalar_lea.sflag [#allocation4], 1
    %430 = vsyncpa %s429, 1

// kernel: tpu_custom_call.1
$region0: #{tpu_custom_call.1}
  #allocation0 [shape = 'u32[]', space=smem, size = 0x4, offset = 0x4, fixed_abs, tag = 'smem constant byte address 0x4 - core index']
  #allocation1 [shape = 'u32[72,128]{1,0:T(1,128)}', space=vmem, size = 0x9000, scoped, tag = 'internal scratch']
  %s0 = inlined_call_operand.hbm [shape: f32[16,32], index: 0, kind: input, shape index: {}]
  %s1 = inlined_call_operand.hbm [shape: f32[32,32], index: 1, kind: input, shape index: {}]
  %s2 = inlined_call_operand.vmem [shape: f32[1,32], index: 2, kind: input, shape index: {}]
  %s3 = inlined_call_operand.hbm [shape: f32[16,32], index: 3, kind: input, shape index: {}]
  %s4 = inlined_call_operand.vmem [shape: f32[1,32], index: 4, kind: input, shape index: {}]
  %s5 = inlined_call_operand.vmem [shape: f32[1,32], index: 5, kind: input, shape index: {}]
  %s6 = inlined_call_operand.hbm [shape: f32[16,32], index: 6, kind: output, shape index: {}]
  %s7 = sld [smem:[#allocation0]]
  $region69: #{tpu_custom_call.1} parent=0
    _
  %s9 = ssub.s32 1, %s7
  %s10 = scalar_select 0, %s9, %s7
  $region1: #{tpu_custom_call.1} parent=0
    #allocation2 [shape = 'u8[8192]{0}', space=vmem, size = 0x2000, scoped, tag = 'input window, operand 0']
    #allocation3 [shape = 's32[2]{0}', space=sflag, size = 0x8, scoped, tag = 'scoped memory for tpu_custom_call.1']
    #allocation4 [shape = 's32[2]{0}', space=sflag, size = 0x8, scoped, tag = 'scoped memory for tpu_custom_call.1']
    #allocation5 [shape = 'u8[16384]{0}', space=vmem, size = 0x4000, scoped, tag = 'input window, operand 1, single buffered']
    #allocation6 [shape = 's32[1]{0}', space=sflag, size = 0x4, scoped, tag = 'scoped memory for tpu_custom_call.1']
    #allocation7 [shape = 'u8[8192]{0}', space=vmem, size = 0x2000, scoped, tag = 'input window, operand 3']
    #allocation8 [shape = 'u8[8192]{0}', space=vmem, size = 0x2000, scoped, tag = 'output window, operand 0']
    %11 = vsyncpa [#allocation3], 0
    %s12 = scalar_lea.sflag [#allocation3], 1
    %13 = vsyncpa %s12, 0
    %14 = vsyncpa [#allocation6], 0
    %15 = vsyncpa [#allocation4], 0
    %s16 = scalar_lea.sflag [#allocation4], 1
    %17 = vsyncpa %s16, 0
    loop: start=0, step=1, limit=4
    $region2: #{tpu_custom_call.1} parent=1 // loop_pre_header
      _
    $region3: #{tpu_custom_call.1} parent=1 // loop_header
      %s19 = sphi 0, %s23
      %p20 = scmp.ge.s32.totalorder %s19, 4
      %s29 = sphi 0, %s31
      %s32 = sphi 0, %s29
      %s33 = sphi 0, %s32
      %s49 = sphi 0, %s33
      %s53 = sphi 0, %s53
      %s55 = sphi 0, %s53
      %s56 = sphi 0, %s55
      %s70 = sphi 0, %s56
      %s74 = sphi 0, %s74
      %s76 = sphi 0, %s74
      %s77 = sphi 0, %s76
      %s91 = sphi 0, %s77
      %s97 = sphi 0, %s99
      %s100 = sphi 0, %s97
      %s101 = sphi 0, %s100
      %s117 = sphi 0, %s101
      %s121 = sphi 0, %s121
      %s123 = sphi 0, %s121
      %s124 = sphi 0, %s123
      %s138 = sphi 0, %s124
      %s142 = sphi 0, %s142
      %s144 = sphi 0, %s142
      %s145 = sphi 0, %s144
      %s159 = sphi 0, %s145
      %s165 = sphi 0, %s167
      %s168 = sphi 0, %s165
      %s169 = sphi 0, %s168
      %s185 = sphi 0, %s169
    $region4: #{tpu_custom_call.1} parent=1 // loop_header_branch
      %22 = sbr.rel (%p20) target = $region8
    $region5: #{tpu_custom_call.1} parent=1 // loop_body
      %s24 = ssub.s32 %s19, 1
      %s25 = ssub.s32 %s19, 2
      %s26 = sadd.s32 %s19, 1
      %s27 = ssub.s32 %s19, %s26
      %p28 = scmp.eq.s32.totalorder %s27, 0
      %s30 = sadd.s32 %s29, 1
      %s31 = scalar_select %p28, %s29, %s30
      %p34 = pneg %p28
      %p35 = scmp.eq.s32.totalorder %s19, 1
      %p36 = por %p34, %p35
      %p37 = scmp.ne.s32.totalorder %s29, %s32
      %p38 = scmp.eq.s32.totalorder %s19, 0
      %p39 = por %p37, %p38
      %p40 = scmp.ne.s32.totalorder %s29, %s32
      %p41 = scmp.eq.s32.totalorder %s24, 1
      %p42 = por %p40, %p41
      %p43 = scmp.ne.s32.totalorder %s32, %s33
      %p44 = scmp.eq.s32.totalorder %s24, 0
      %p45 = por %p43, %p44
      %p46 = scmp.ne.s32.totalorder %s32, %s33
      %p47 = scmp.eq.s32.totalorder %s25, 1
      %p48 = por %p46, %p47
      %p50 = scmp.ne.s32.totalorder %s33, %s49
      %p51 = scmp.eq.s32.totalorder %s25, 0
      %p52 = por %p50, %p51
      %s54 = sadd.s32 %s53, 1
      %p57 = scmp.eq.s32.totalorder %s19, 1
      %p58 = scmp.ne.s32.totalorder %s53, %s55
      %p59 = scmp.eq.s32.totalorder %s19, 0
      %p60 = por %p58, %p59
      %p61 = scmp.ne.s32.totalorder %s53, %s55
      %p62 = scmp.eq.s32.totalorder %s24, 1
      %p63 = por %p61, %p62
      %p64 = scmp.ne.s32.totalorder %s55, %s56
      %p65 = scmp.eq.s32.totalorder %s24, 0
      %p66 = por %p64, %p65
      %p67 = scmp.ne.s32.totalorder %s55, %s56
      %p68 = scmp.eq.s32.totalorder %s25, 1
      %p69 = por %p67, %p68
      %p71 = scmp.ne.s32.totalorder %s56, %s70
      %p72 = scmp.eq.s32.totalorder %s25, 0
      %p73 = por %p71, %p72
      %s75 = sadd.s32 %s74, 1
      %p78 = scmp.eq.s32.totalorder %s19, 1
      %p79 = scmp.ne.s32.totalorder %s74, %s76
      %p80 = scmp.eq.s32.totalorder %s19, 0
      %p81 = por %p79, %p80
      %p82 = scmp.ne.s32.totalorder %s74, %s76
      %p83 = scmp.eq.s32.totalorder %s24, 1
      %p84 = por %p82, %p83
      %p85 = scmp.ne.s32.totalorder %s76, %s77
      %p86 = scmp.eq.s32.totalorder %s24, 0
      %p87 = por %p85, %p86
      %p88 = scmp.ne.s32.totalorder %s76, %s77
      %p89 = scmp.eq.s32.totalorder %s25, 1
      %p90 = por %p88, %p89
      %p92 = scmp.ne.s32.totalorder %s77, %s91
      %p93 = scmp.eq.s32.totalorder %s25, 0
      %p94 = por %p92, %p93
      %s95 = ssub.s32 %s19, %s26
      %p96 = scmp.eq.s32.totalorder %s95, 0
      %s98 = sadd.s32 %s97, 1
      %s99 = scalar_select %p96, %s97, %s98
      %p102 = pneg %p96
      %p103 = scmp.eq.s32.totalorder %s19, 1
      %p104 = por %p102, %p103
      %p105 = scmp.ne.s32.totalorder %s97, %s100
      %p106 = scmp.eq.s32.totalorder %s19, 0
      %p107 = por %p105, %p106
      %p108 = scmp.ne.s32.totalorder %s97, %s100
      %p109 = scmp.eq.s32.totalorder %s24, 1
      %p110 = por %p108, %p109
      %p111 = scmp.ne.s32.totalorder %s100, %s101
      %p112 = scmp.eq.s32.totalorder %s24, 0
      %p113 = por %p111, %p112
      %p114 = scmp.ne.s32.totalorder %s100, %s101
      %p115 = scmp.eq.s32.totalorder %s25, 1
      %p116 = por %p114, %p115
      %p118 = scmp.ne.s32.totalorder %s101, %s117
      %p119 = scmp.eq.s32.totalorder %s25, 0
      %p120 = por %p118, %p119
      %s122 = sadd.s32 %s121, 1
      %p125 = scmp.eq.s32.totalorder %s19, 1
      %p126 = scmp.ne.s32.totalorder %s121, %s123
      %p127 = scmp.eq.s32.totalorder %s19, 0
      %p128 = por %p126, %p127
      %p129 = scmp.ne.s32.totalorder %s121, %s123
      %p130 = scmp.eq.s32.totalorder %s24, 1
      %p131 = por %p129, %p130
      %p132 = scmp.ne.s32.totalorder %s123, %s124
      %p133 = scmp.eq.s32.totalorder %s24, 0
      %p134 = por %p132, %p133
      %p135 = scmp.ne.s32.totalorder %s123, %s124
      %p136 = scmp.eq.s32.totalorder %s25, 1
      %p137 = por %p135, %p136
      %p139 = scmp.ne.s32.totalorder %s124, %s138
      %p140 = scmp.eq.s32.totalorder %s25, 0
      %p141 = por %p139, %p140
      %s143 = sadd.s32 %s142, 1
      %p146 = scmp.eq.s32.totalorder %s19, 1
      %p147 = scmp.ne.s32.totalorder %s142, %s144
      %p148 = scmp.eq.s32.totalorder %s19, 0
      %p149 = por %p147, %p148
      %p150 = scmp.ne.s32.totalorder %s142, %s144
      %p151 = scmp.eq.s32.totalorder %s24, 1
      %p152 = por %p150, %p151
      %p153 = scmp.ne.s32.totalorder %s144, %s145
      %p154 = scmp.eq.s32.totalorder %s24, 0
      %p155 = por %p153, %p154
      %p156 = scmp.ne.s32.totalorder %s144, %s145
      %p157 = scmp.eq.s32.totalorder %s25, 1
      %p158 = por %p156, %p157
      %p160 = scmp.ne.s32.totalorder %s145, %s159
      %p161 = scmp.eq.s32.totalorder %s25, 0
      %p162 = por %p160, %p161
      %s163 = ssub.s32 %s19, %s26
      %p164 = scmp.eq.s32.totalorder %s163, 0
      %s166 = sadd.s32 %s165, 1
      %s167 = scalar_select %p164, %s165, %s166
      %p170 = pneg %p164
      %p171 = scmp.eq.s32.totalorder %s19, 1
      %p172 = por %p170, %p171
      %p173 = scmp.ne.s32.totalorder %s165, %s168
      %p174 = scmp.eq.s32.totalorder %s19, 0
      %p175 = por %p173, %p174
      %p176 = scmp.ne.s32.totalorder %s165, %s168
      %p177 = scmp.eq.s32.totalorder %s24, 1
      %p178 = por %p176, %p177
      %p179 = scmp.ne.s32.totalorder %s168, %s169
      %p180 = scmp.eq.s32.totalorder %s24, 0
      %p181 = por %p179, %p180
      %p182 = scmp.ne.s32.totalorder %s168, %s169
      %p183 = scmp.eq.s32.totalorder %s25, 1
      %p184 = por %p182, %p183
      %p186 = scmp.ne.s32.totalorder %s169, %s185
      %p187 = scmp.eq.s32.totalorder %s25, 0
      %p188 = por %p186, %p187
      %p189 = scmp.le.s32.totalorder 1, %s19
      %p190 = scmp.lt.s32.totalorder %s19, 3
      %p191 = pnand %p189, %p190
      %p192 = pneg %p191
      // Predicated region
      $region9: #{tpu_custom_call.1} parent=5 // pred_check
        _
      $region10: #{tpu_custom_call.1} parent=5 // pred_check_branch
        %194 = sbr.rel (%p191) target = $region12
      $region11: #{tpu_custom_call.1} parent=5 // pred_region
        %s195 = ssub.s32 %s19, 1
        // Predicated region
        $region13: #{tpu_custom_call.1} parent=11 // pred_check
          %p196 = pneg %p66
        $region14: #{tpu_custom_call.1} parent=11 // pred_check_branch
          %198 = sbr.rel (%p196) target = $region16
        $region15: #{tpu_custom_call.1} parent=11 // pred_region
          %200 = vsyncadd [#allocation6], 0
          %s201 = sshll.u32 %s1, 4
          %s202 = int_to_ptr.hbm [resolvable:$true] %s201
          %s203 = sshll.u32 [#allocation5], 4
          %s204 = int_to_ptr.vmem [resolvable:$true] %s203
          %209 = dma.hbm_to_vmem [thread:$0]  %s202, 512, %s204, [#allocation6], 128, 128, 8
        $region16: #{tpu_custom_call.1} parent=11 // pred_fallthru
          _
        // Predicated region
        $region17: #{tpu_custom_call.1} parent=11 // pred_check
          %p210 = pneg %p87
        $region18: #{tpu_custom_call.1} parent=11 // pred_check_branch
          %212 = sbr.rel (%p210) target = $region20
        $region19: #{tpu_custom_call.1} parent=11 // pred_region
          _
        $region20: #{tpu_custom_call.1} parent=11 // pred_fallthru
          _
        // Predicated region
        $region21: #{tpu_custom_call.1} parent=11 // pred_check
          %p213 = pneg %p134
        $region22: #{tpu_custom_call.1} parent=11 // pred_check_branch
          %215 = sbr.rel (%p213) target = $region24
        $region23: #{tpu_custom_call.1} parent=11 // pred_region
          _
        $region24: #{tpu_custom_call.1} parent=11 // pred_fallthru
          _
        // Predicated region
        $region25: #{tpu_custom_call.1} parent=11 // pred_check
          %p216 = pneg %p155
        $region26: #{tpu_custom_call.1} parent=11 // pred_check_branch
          %218 = sbr.rel (%p216) target = $region28
        $region27: #{tpu_custom_call.1} parent=11 // pred_region
          _
        $region28: #{tpu_custom_call.1} parent=11 // pred_fallthru
          _
      $region12: #{tpu_custom_call.1} parent=5 // pred_fallthru
        _
      %p219 = scmp.lt.s32.totalorder %s19, 2
      // Predicated region
      $region29: #{tpu_custom_call.1} parent=5 // pred_check
        %p220 = pneg %p219
      $region30: #{tpu_custom_call.1} parent=5 // pred_check_branch
        %222 = sbr.rel (%p220) target = $region32
      $region31: #{tpu_custom_call.1} parent=5 // pred_region
        // Predicated region
        $region33: #{tpu_custom_call.1} parent=31 // pred_check
          %p223 = pneg %p39
        $region34: #{tpu_custom_call.1} parent=31 // pred_check_branch
          %225 = sbr.rel (%p223) target = $region36
        $region35: #{tpu_custom_call.1} parent=31 // pred_region
          %s226 = sand.u32 %s19, 1
          %s227 = scalar_lea.sflag [#allocation3], %s226
          %s228 = sand.u32 %s29, 1
          %s229 = smul.addr %s228, 8
          %s230 = scalar_lea.vmem [#allocation2], %s229
          %232 = vsyncadd %s227, 0
          %s233 = smul.addr %s19, 8
          %s234 = scalar_lea.hbm %s0, %s233
          %s236 = sshll.u32 %s234, 4
          %s237 = int_to_ptr.hbm [resolvable:$true] %s236
          %s238 = sshll.u32 %s230, 4
          %s239 = int_to_ptr.vmem [resolvable:$true] %s238
          %241 = dma.hbm_to_vmem [thread:$0]  %s237, 128, %s239, %s227
        $region36: #{tpu_custom_call.1} parent=31 // pred_fallthru
          _
        // Predicated region
        $region37: #{tpu_custom_call.1} parent=31 // pred_check
          %p242 = pneg %p107
        $region38: #{tpu_custom_call.1} parent=31 // pred_check_branch
          %244 = sbr.rel (%p242) target = $region40
        $region39: #{tpu_custom_call.1} parent=31 // pred_region
          %s245 = sand.u32 %s19, 1
          %s246 = scalar_lea.sflag [#allocation3], %s245
          %s247 = sand.u32 %s97, 1
          %s248 = smul.addr %s247, 8
          %s249 = scalar_lea.vmem [#allocation7], %s248
          %251 = vsyncadd %s246, 0
          %s252 = smul.addr %s19, 8
          %s253 = scalar_lea.hbm %s3, %s252
          %s255 = sshll.u32 %s253, 4
          %s256 = int_to_ptr.hbm [resolvable:$true] %s255
          %s257 = sshll.u32 %s249, 4
          %s258 = int_to_ptr.vmem [resolvable:$true] %s257
          %260 = dma.hbm_to_vmem [thread:$0]  %s256, 128, %s258, %s246
        $region40: #{tpu_custom_call.1} parent=31 // pred_fallthru
          _
      $region32: #{tpu_custom_call.1} parent=5 // pred_fallthru
        _
      %p261 = scmp.le.s32.totalorder 1, %s19
      %p262 = scmp.lt.s32.totalorder %s19, 3
      %p263 = pnand %p261, %p262
      %p264 = pneg %p263
      // Predicated region
      $region41: #{tpu_custom_call.1} parent=5 // pred_check
        _
      $region42: #{tpu_custom_call.1} parent=5 // pred_check_branch
        %266 = sbr.rel (%p263) target = $region44
      $region43: #{tpu_custom_call.1} parent=5 // pred_region
        %s267 = ssub.s32 %s19, 1
        %s268 = sand.u32 %s24, 1
        %s269 = scalar_lea.sflag [#allocation3], %s268
        %s270 = sand.u32 %s32, 1
        %s271 = smul.addr %s270, 8
        %s272 = scalar_lea.vmem [#allocation2], %s271
        // Predicated region
        $region45: #{tpu_custom_call.1} parent=43 // pred_check
          %p273 = pneg %p45
        $region46: #{tpu_custom_call.1} parent=43 // pred_check_branch
          %275 = sbr.rel (%p273) target = $region48
        $region47: #{tpu_custom_call.1} parent=43 // pred_region
          %277 = dma.done %s269, 128
        $region48: #{tpu_custom_call.1} parent=43 // pred_fallthru
          _
        // Predicated region
        $region49: #{tpu_custom_call.1} parent=43 // pred_check
          %p278 = pneg %p66
        $region50: #{tpu_custom_call.1} parent=43 // pred_check_branch
          %280 = sbr.rel (%p278) target = $region52
        $region51: #{tpu_custom_call.1} parent=43 // pred_region
          %282 = dma.done [#allocation6], 512
        $region52: #{tpu_custom_call.1} parent=43 // pred_fallthru
          _
        %s283 = sand.u32 %s24, 1
        %s284 = scalar_lea.sflag [#allocation3], %s283
        %s285 = sand.u32 %s100, 1
        %s286 = smul.addr %s285, 8
        %s287 = scalar_lea.vmem [#allocation7], %s286
        // Predicated region
        $region53: #{tpu_custom_call.1} parent=43 // pred_check
          %p288 = pneg %p113
        $region54: #{tpu_custom_call.1} parent=43 // pred_check_branch
          %290 = sbr.rel (%p288) target = $region56
        $region55: #{tpu_custom_call.1} parent=43 // pred_region
          %292 = dma.done %s284, 128
        $region56: #{tpu_custom_call.1} parent=43 // pred_fallthru
          _
        %s293 = sand.u32 %s24, 1
        %s294 = scalar_lea.sflag [#allocation3], %s293
        %s295 = sand.u32 %s32, 1
        %s296 = smul.addr %s295, 8
        %s297 = scalar_lea.vmem [#allocation2], %s296
        %p298 = pneg %p45
        %p299 = pneg %p42
        %p300 = pneg %p66
        %p301 = pneg %p63
        %p302 = pneg %p87
        %p303 = pneg %p84
        %s304 = sand.u32 %s24, 1
        %s305 = scalar_lea.sflag [#allocation3], %s304
        %s306 = sand.u32 %s100, 1
        %s307 = smul.addr %s306, 8
        %s308 = scalar_lea.vmem [#allocation7], %s307
        %p309 = pneg %p113
        %p310 = pneg %p110
        %p311 = pneg %p134
        %p312 = pneg %p131
        %p313 = pneg %p155
        %p314 = pneg %p152
        %p315 = pneg %p181
        %p316 = pneg %p178
        %s317 = sand.u32 %s168, 1
        %s318 = scalar_lea.sflag [#allocation4], %s317
        %s319 = sand.u32 %s168, 1
        %s320 = smul.addr %s319, 8
        %s321 = scalar_lea.vmem [#allocation8], %s320
        %v322 = vld [vmem:[%s272] sm:$0xff]
        %v323 = vld [vmem:[#allocation5] sm:$0xff]
        %v324 = vld [vmem:[#allocation5 + $0x8] sm:$0xff]
        %v325 = vld [vmem:[#allocation5 + $0x10] sm:$0xff]
        %v326 = vld [vmem:[#allocation5 + $0x18] sm:$0xff]
        %v327 = vld [vmem:[%s2] sm:$0x1]
        %v329 = vperm.slane %v327, 0
        %vm331 = vcmask 261120
        %v333 = vsel %vm331, %v322, 0
        %335 = vmatpush.msra.mxu0 0.0
        %336 = vmatpush.msra.mxu0 0.0
        %337 = vmatpush.msra.mxu0 0.0
        %338 = vmatpush.msra.mxu0 0.0
        %339 = vmatpush.msra.mxu0 0.0
        %340 = vmatpush.msra.mxu0 0.0
        %341 = vmatpush.msra.mxu0 0.0
        %342 = vmatpush.msra.mxu0 0.0
        %343 = vmatpush.msra.mxu0 0.0
        %344 = vmatpush.msra.mxu0 0.0
        %345 = vmatpush.msra.mxu0 0.0
        %346 = vmatpush.msra.mxu0 0.0
        %347 = vmatpush.msra.mxu0 %v326
        %348 = vmatpush.msra.mxu0 %v325
        %349 = vmatpush.msra.mxu0 %v324
        %350 = vmatpush.msra.mxu0 %v323
        %351 = vmatmul.f32.gmra.mxu0 %v333
        %v352 = vpop.f32.mrf.mxu0
        %v353 = vadd.f32 %v329, %v352
        %354 = vdwg.mxu0
        %v355 = vld [vmem:[%s287] sm:$0xff]
        %v356 = vadd.f32 %v353, %v355
        %v357 = vld [vmem:[%s4] sm:$0x1]
        %v358 = vld [vmem:[%s5] sm:$0x1]
        %v359 = vsel %vm331, %v356, 0.0
        %360 = vadd.xlane.f32.xlu0 %v359
        %v361 = vpop.xlane.xlu0 %360
        %v362 = vmul.f32 %v361, 0.03125
        %v363 = vsub.f32 %v356, %v362
        %v364 = vmul.f32 %v363, %v363
        %v365 = vsel %vm331, %v364, 0.0
        %366 = vadd.xlane.f32.xlu0 %v365
        %v367 = vpop.xlane.xlu0 %366
        %v368 = vmul.f32 %v367, 0.03125
        %v369 = vadd.f32 %v368, 1e-05
        %v370 = vrsqrt.pop %v369
        %v371 = vmul.f32 %v370, %v369
        %v372 = vmul.f32 %v371, %v370
        %v373 = vmul.f32 0.5, %v372
        %v374 = vsub.f32 1.5, %v373
        %v375 = vmul.f32 %v370, %v374
        %vm376 = vweird.f32 %v369
        %vm377 = vweird.f32 %v370
        %vm378 = vmor %vm376, %vm377
        %v379 = vsel %vm378, %v370, %v375
        %v380 = vmul.f32 %v363, %v379
        %v382 = vperm.slane %v357, 0
        %v384 = vmul.f32 %v380, %v382
        %v386 = vperm.slane %v358, 0
        %v388 = vadd.f32 %v384, %v386
        %389 = vst.msk [vmem:[%s321] sm:$0xff] %vm331, %v388
        %s390 = sand.u32 %s168, 1
        %s391 = scalar_lea.sflag [#allocation4], %s390
        %s392 = sand.u32 %s168, 1
        %s393 = smul.addr %s392, 8
        %s394 = scalar_lea.vmem [#allocation8], %s393
        // Predicated region
        $region57: #{tpu_custom_call.1} parent=43 // pred_check
          %p395 = pneg %p178
        $region58: #{tpu_custom_call.1} parent=43 // pred_check_branch
          %397 = sbr.rel (%p395) target = $region60
        $region59: #{tpu_custom_call.1} parent=43 // pred_region
          %399 = vsyncadd %s391, 0
          %s400 = smul.addr %s24, 8
          %s401 = scalar_lea.hbm %s6, %s400
          %s403 = sshll.u32 %s394, 4
          %s404 = int_to_ptr.vmem [resolvable:$true] %s403
          %s405 = sshll.u32 %s401, 4
          %s406 = int_to_ptr.hbm [resolvable:$true] %s405
          %408 = dma.vmem_to_hbm [thread:$0]  %s404, 128, %s406, %s391
        $region60: #{tpu_custom_call.1} parent=43 // pred_fallthru
          _
      $region44: #{tpu_custom_call.1} parent=5 // pred_fallthru
        _
      %p409 = scmp.le.s32.totalorder 2, %s19
      // Predicated region
      $region61: #{tpu_custom_call.1} parent=5 // pred_check
        %p410 = pneg %p409
      $region62: #{tpu_custom_call.1} parent=5 // pred_check_branch
        %412 = sbr.rel (%p410) target = $region64
      $region63: #{tpu_custom_call.1} parent=5 // pred_region
        %s413 = ssub.s32 %s19, 2
        // Predicated region
        $region65: #{tpu_custom_call.1} parent=63 // pred_check
          %p414 = pneg %p184
        $region66: #{tpu_custom_call.1} parent=63 // pred_check_branch
          %416 = sbr.rel (%p414) target = $region68
        $region67: #{tpu_custom_call.1} parent=63 // pred_region
          %s417 = sand.u32 %s169, 1
          %s418 = scalar_lea.sflag [#allocation4], %s417
          %s419 = sand.u32 %s169, 1
          %s420 = smul.addr %s419, 8
          %s421 = scalar_lea.vmem [#allocation8], %s420
          %423 = dma.done %s418, 128
        $region68: #{tpu_custom_call.1} parent=63 // pred_fallthru
          _
      $region64: #{tpu_custom_call.1} parent=5 // pred_fallthru
        _
    $region6: #{tpu_custom_call.1} parent=1 // loop_footer
      %s23 = sadd.s32 1, %s19
    $region7: #{tpu_custom_call.1} parent=1 // loop_footer_branch
      %18 = sbr.rel target = $region3
    $region8: #{tpu_custom_call.1} parent=1 // loop_exit
      _
    %424 = vsyncpa [#allocation3], 1
    %s425 = scalar_lea.sflag [#allocation3], 1
    %426 = vsyncpa %s425, 1
    %427 = vsyncpa [#allocation6], 1
    %428 = vsyncpa [#allocation4], 1
    %s429 = scalar_lea.sflag [#allocation4], 1
    %430 = vsyncpa %s429, 1

</llo_original>
